<compile_context>
chip_gen: v7x
topology: tpu7x:2x2x1
jax: 0.10.0
libtpu: 0.0.40
codegen_flags: <defaults>
</compile_context>

<pallas_src>
import jax
import jax.numpy as jnp
from jax.experimental import pallas as pl
from jax.experimental.pallas import tpu as pltpu


def _round_up(n, m):
    return ((n + m - 1) // m) * m


def _vmem_limit(bytes_needed):
    # Never below the 32 MiB default scoped limit; never above v7x's 64 MiB physical VMEM.
    return int(min(max(bytes_needed + (4 << 20), 32 << 20), 64 << 20))


# ---------------------------------------------------------------------------
# Kernel 1 (fused): all layer weights resident in VMEM, one grid step per batch
# tile, statically-unrolled layer loop. Used when L*F*F is small.
# ---------------------------------------------------------------------------
def _mlp_fused_kernel(x_ref, w_ref, b_ref, o_ref):
    # x_ref: (TB, F)  w_ref: (L, F, F) already (in, out)  b_ref: (L, 1, F)  o_ref: (TB, F)
    h = x_ref[...].astype(jnp.float32)
    n_layers = w_ref.shape[0]
    for l in range(n_layers):  # static unroll over layers
        h = jnp.dot(h, w_ref[l], preferred_element_type=jnp.float32) + b_ref[l]
    o_ref[...] = h.astype(o_ref.dtype)


# ---------------------------------------------------------------------------
# Kernel 2 (layered): grid = (batch_tiles, n_layers). The layer axis is a
# sequential ("arbitrary") dimension; the activation is carried in the output
# block (same block index for every layer); weights stream one layer at a time.
# ---------------------------------------------------------------------------
def _mlp_layered_kernel(x_ref, w_ref, b_ref, o_ref):
    layer = pl.program_id(1)

    # First layer: seed the carried activation (the output block) with the input.
    @pl.when(layer == 0)
    def _():
        o_ref[...] = x_ref[...]

    h = o_ref[...].astype(jnp.float32)
    b = b_ref[layer]  # dynamic leading-axis index into the resident (L, 1, F) bias table
    y = jnp.dot(h, w_ref[0], preferred_element_type=jnp.float32) + b
    o_ref[...] = y.astype(o_ref.dtype)


def my_model_forward(x, weights, biases, *, force_layered=False,
                     fused_weight_bytes_limit=4 << 20):
    """MyModel forward.

    x:       (B, F)
    weights: (L, F, F)  -- PyTorch nn.Linear layout (out_features, in_features)
    biases:  (L, F)
    returns: (B, F)
    """
    B, F = x.shape
    L = weights.shape[0]

    # ---- wrapper-side layout plumbing ----------------------------------------------------
    # Pre-transpose once to (L, in, out) so the kernel never transposes.
    w_t = jnp.swapaxes(weights, 1, 2)

    # Lane-dense feature dim (multiple of 128) and sublane-aligned batch (multiple of 8).
    Fp = _round_up(max(F, 128), 128)
    TB = 256 if B > 256 else _round_up(B, 8)
    Bp = _round_up(B, TB)

    pad = (Fp != F) or (Bp != B)
    if pad:
        x_p = jnp.zeros((Bp, Fp), x.dtype).at[:B, :F].set(x)
        w_p = jnp.zeros((L, Fp, Fp), w_t.dtype).at[:, :F, :F].set(w_t)
        b_p = jnp.zeros((L, 1, Fp), biases.dtype).at[:, 0, :F].set(biases)
    else:
        x_p = x
        w_p = w_t
        b_p = biases.reshape(L, 1, Fp)

    n_batch_tiles = Bp // TB
    act_bytes = TB * Fp * x.dtype.itemsize
    w_bytes = L * Fp * Fp * w_p.dtype.itemsize
    b_bytes = L * Fp * b_p.dtype.itemsize

    use_fused = (not force_layered) and (w_bytes <= fused_weight_bytes_limit)

    if use_fused:
        vmem_need = 2 * act_bytes + w_bytes + b_bytes + 2 * act_bytes + 4 * TB * Fp * 4
        call = pl.pallas_call(
            _mlp_fused_kernel,
            out_shape=jax.ShapeDtypeStruct((Bp, Fp), x.dtype),
            grid_spec=pltpu.PrefetchScalarGridSpec(
                num_scalar_prefetch=0,
                grid=(n_batch_tiles,),
                in_specs=[
                    pl.BlockSpec((TB, Fp), lambda bi: (bi, 0)),          # x tile
                    pl.BlockSpec((L, Fp, Fp), lambda bi: (0, 0, 0)),     # all weights, resident
                    pl.BlockSpec((L, 1, Fp), lambda bi: (0, 0, 0)),      # all biases, resident
                ],
                out_specs=pl.BlockSpec((TB, Fp), lambda bi: (bi, 0)),
            ),
            compiler_params=pltpu.CompilerParams(
                dimension_semantics=("parallel",),                       # megacore over batch tiles
                vmem_limit_bytes=_vmem_limit(vmem_need),
            ),
        )
    else:
        w_tile_bytes = Fp * Fp * w_p.dtype.itemsize
        vmem_need = 2 * act_bytes + 2 * w_tile_bytes + b_bytes + 2 * act_bytes + 4 * TB * Fp * 4
        call = pl.pallas_call(
            _mlp_layered_kernel,
            out_shape=jax.ShapeDtypeStruct((Bp, Fp), x.dtype),
            grid_spec=pltpu.PrefetchScalarGridSpec(
                num_scalar_prefetch=0,
                grid=(n_batch_tiles, L),
                in_specs=[
                    pl.BlockSpec((TB, Fp), lambda bi, l: (bi, 0)),       # x tile (read at l==0)
                    pl.BlockSpec((1, Fp, Fp), lambda bi, l: (l, 0, 0)),  # W_l, streamed per layer
                    pl.BlockSpec((L, 1, Fp), lambda bi, l: (0, 0, 0)),   # all biases, resident
                ],
                out_specs=pl.BlockSpec((TB, Fp), lambda bi, l: (bi, 0)),  # carried activation
            ),
            compiler_params=pltpu.CompilerParams(
                dimension_semantics=("parallel", "arbitrary"),
                vmem_limit_bytes=_vmem_limit(vmem_need),
            ),
        )

    out_p = call(x_p, w_p, b_p)
    return out_p[:B, :F] if pad else out_p


def _reference_forward(x, weights, biases):
    h = x.astype(jnp.float32)
    for l in range(weights.shape[0]):
        h = h @ weights[l].T + biases[l]
    return h.astype(x.dtype)


if __name__ == "__main__":
    # Small shapes consistent with MyModel(n_features, n_layers).
    batch = 8
    n_features = 32
    n_layers = 3

    key = jax.random.PRNGKey(0)
    kx, kw, kb = jax.random.split(key, 3)

    x = jax.random.normal(kx, (batch, n_features), dtype=jnp.float32)

    # Deterministic init mimicking nn.Linear's uniform(-1/sqrt(fan_in), 1/sqrt(fan_in)).
    bound = 1.0 / jnp.sqrt(jnp.float32(n_features))
    weights = jax.random.uniform(
        kw, (n_layers, n_features, n_features), dtype=jnp.float32,
        minval=-bound, maxval=bound)
    biases = jax.random.uniform(
        kb, (n_layers, n_features), dtype=jnp.float32,
        minval=-bound, maxval=bound)

    ref = _reference_forward(x, weights, biases)

    # Fused path (auto-selected for these tiny shapes).
    out = jax.block_until_ready(my_model_forward(x, weights, biases))
    assert out.shape == (batch, n_features)
    assert jnp.allclose(out, ref, atol=1e-4, rtol=1e-4), "fused path mismatch vs reference"

    # Layered (weight-streaming) path, exercised explicitly for coverage.
    out_l = jax.block_until_ready(my_model_forward(x, weights, biases, force_layered=True))
    assert jnp.allclose(out_l, ref, atol=1e-4, rtol=1e-4), "layered path mismatch vs reference"

    print("KERNEL_OK")
</pallas_src>

<mosaic_0001>
module attributes {stable_mosaic.version = 11 : i64} {
  func.func @_mlp_fused_kernel(%arg0: i32, %arg1: memref<8x128xf32, #tpu.memory_space<vmem>>, %arg2: memref<3x128x128xf32, #tpu.memory_space<vmem>>, %arg3: memref<3x1x128xf32, #tpu.memory_space<vmem>>, %arg4: memref<8x128xf32, #tpu.memory_space<vmem>>) attributes {dimension_semantics = [#tpu.dimension_semantics<parallel>], iteration_bounds = array<i64: 1>, scalar_prefetch = 0 : i64, scratch_operands = 0 : i64, tpu.core_type = #tpu.core_type<tc>, window_params = [{transform_indices = @transform_0, window_bounds = array<i64: 8, 128>}, {pipeline_mode = #tpu.pipeline_mode<synchronous>, transform_indices = @transform_1, window_bounds = array<i64: 3, 128, 128>}, {pipeline_mode = #tpu.pipeline_mode<synchronous>, transform_indices = @transform_2, window_bounds = array<i64: 3, 1, 128>}, {transform_indices = @transform_3, window_bounds = array<i64: 8, 128>}]} {
    %c0 = arith.constant 0 : index
    %c0_0 = arith.constant 0 : index
    %0 = vector.load %arg1[%c0, %c0_0] : memref<8x128xf32, #tpu.memory_space<vmem>>, vector<8x128xf32>
    %c0_1 = arith.constant 0 : index
    %c0_2 = arith.constant 0 : index
    %c0_3 = arith.constant 0 : index
    %1 = vector.load %arg2[%c0_1, %c0_2, %c0_3] : memref<3x128x128xf32, #tpu.memory_space<vmem>>, vector<1x128x128xf32>
    %2 = vector.shape_cast %1 : vector<1x128x128xf32> to vector<128x128xf32>
    %cst = arith.constant dense<0.000000e+00> : vector<8x128xf32>
    %3 = tpu.matmul %0, %2, %cst {dimension_numbers = #tpu.dot_dimension_numbers<[1], [0], [0], [1], [0, 0, 1, 1], [], []>} : vector<8x128xf32>, vector<128x128xf32>, vector<8x128xf32> -> vector<8x128xf32>
    %c0_4 = arith.constant 0 : index
    %c0_5 = arith.constant 0 : index
    %c0_6 = arith.constant 0 : index
    %4 = vector.load %arg3[%c0_4, %c0_5, %c0_6] : memref<3x1x128xf32, #tpu.memory_space<vmem>>, vector<1x1x128xf32>
    %5 = vector.shape_cast %4 : vector<1x1x128xf32> to vector<1x128xf32>
    %6 = vector.broadcast %5 : vector<1x128xf32> to vector<8x128xf32>
    %7 = arith.addf %3, %6 : vector<8x128xf32>
    %c1 = arith.constant 1 : index
    %c0_7 = arith.constant 0 : index
    %c0_8 = arith.constant 0 : index
    %8 = vector.load %arg2[%c1, %c0_7, %c0_8] : memref<3x128x128xf32, #tpu.memory_space<vmem>>, vector<1x128x128xf32>
    %9 = vector.shape_cast %8 : vector<1x128x128xf32> to vector<128x128xf32>
    %cst_9 = arith.constant dense<0.000000e+00> : vector<8x128xf32>
    %10 = tpu.matmul %7, %9, %cst_9 {dimension_numbers = #tpu.dot_dimension_numbers<[1], [0], [0], [1], [0, 0, 1, 1], [], []>} : vector<8x128xf32>, vector<128x128xf32>, vector<8x128xf32> -> vector<8x128xf32>
    %c1_10 = arith.constant 1 : index
    %c0_11 = arith.constant 0 : index
    %c0_12 = arith.constant 0 : index
    %11 = vector.load %arg3[%c1_10, %c0_11, %c0_12] : memref<3x1x128xf32, #tpu.memory_space<vmem>>, vector<1x1x128xf32>
    %12 = vector.shape_cast %11 : vector<1x1x128xf32> to vector<1x128xf32>
    %13 = vector.broadcast %12 : vector<1x128xf32> to vector<8x128xf32>
    %14 = arith.addf %10, %13 : vector<8x128xf32>
    %c2 = arith.constant 2 : index
    %c0_13 = arith.constant 0 : index
    %c0_14 = arith.constant 0 : index
    %15 = vector.load %arg2[%c2, %c0_13, %c0_14] : memref<3x128x128xf32, #tpu.memory_space<vmem>>, vector<1x128x128xf32>
    %16 = vector.shape_cast %15 : vector<1x128x128xf32> to vector<128x128xf32>
    %cst_15 = arith.constant dense<0.000000e+00> : vector<8x128xf32>
    %17 = tpu.matmul %14, %16, %cst_15 {dimension_numbers = #tpu.dot_dimension_numbers<[1], [0], [0], [1], [0, 0, 1, 1], [], []>} : vector<8x128xf32>, vector<128x128xf32>, vector<8x128xf32> -> vector<8x128xf32>
    %c2_16 = arith.constant 2 : index
    %c0_17 = arith.constant 0 : index
    %c0_18 = arith.constant 0 : index
    %18 = vector.load %arg3[%c2_16, %c0_17, %c0_18] : memref<3x1x128xf32, #tpu.memory_space<vmem>>, vector<1x1x128xf32>
    %19 = vector.shape_cast %18 : vector<1x1x128xf32> to vector<1x128xf32>
    %20 = vector.broadcast %19 : vector<1x128xf32> to vector<8x128xf32>
    %21 = arith.addf %17, %20 : vector<8x128xf32>
    %c0_19 = arith.constant 0 : index
    %c0_20 = arith.constant 0 : index
    %22 = vector.load %arg4[%c0_19, %c0_20] : memref<8x128xf32, #tpu.memory_space<vmem>>, vector<8x128xf32>
    tpu.vector_store %arg4[%c0_19, %c0_20], %21 {strides = array<i32>} : memref<8x128xf32, #tpu.memory_space<vmem>>, vector<8x128xf32>,
    return
  }
  func.func @transform_0(%arg0: i32) -> (i32, i32) {
    %c0_i32 = arith.constant 0 : i32
    %c0_i32_0 = arith.constant 0 : i32
    return %arg0, %c0_i32 : i32, i32
  }
  func.func @transform_1(%arg0: i32) -> (i32, i32, i32) {
    %c0_i32 = arith.constant 0 : i32
    %c0_i32_0 = arith.constant 0 : i32
    %c0_i32_1 = arith.constant 0 : i32
    %c0_i32_2 = arith.constant 0 : i32
    return %c0_i32, %c0_i32_0, %c0_i32_1 : i32, i32, i32
  }
  func.func @transform_2(%arg0: i32) -> (i32, i32, i32) {
    %c0_i32 = arith.constant 0 : i32
    %c0_i32_0 = arith.constant 0 : i32
    %c0_i32_1 = arith.constant 0 : i32
    %c0_i32_2 = arith.constant 0 : i32
    return %c0_i32, %c0_i32_0, %c0_i32_1 : i32, i32, i32
  }
  func.func @transform_3(%arg0: i32) -> (i32, i32) {
    %c0_i32 = arith.constant 0 : i32
    %c0_i32_0 = arith.constant 0 : i32
    return %arg0, %c0_i32 : i32, i32
  }
}

</mosaic_0001>

<llo_original>
// kernel: tpu_custom_call.1
$region0: #{tpu_custom_call.1}
  #allocation0 [shape = 'u32[]', space=smem, size = 0x4, offset = 0x4, fixed_abs, tag = 'smem constant byte address 0x4 - core index']
  #allocation1 [shape = 'u32[144,128]{1,0:T(1,128)}', space=vmem, size = 0x12000, scoped, tag = 'internal scratch']
  %s0 = inlined_call_operand.hbm [shape: f32[8,128], index: 0, kind: input, shape index: {}]
  %s1 = inlined_call_operand.hbm [shape: f32[3,128,128], index: 1, kind: input, shape index: {}]
  %s2 = inlined_call_operand.vmem [shape: f32[3,1,128], index: 2, kind: input, shape index: {}]
  %s3 = inlined_call_operand.hbm [shape: f32[8,128], index: 3, kind: output, shape index: {}]
  %s4 = sld [smem:[#allocation0]]
  $region30: #{tpu_custom_call.1} parent=0
    _
  %s6 = ssub.s32 1, %s4
  %s7 = scalar_select 0, %s6, %s4
  $region1: #{tpu_custom_call.1} parent=0
    #allocation2 [shape = 'u8[4096]{0}', space=vmem, size = 0x1000, scoped, tag = 'input window, operand 0, single buffered']
    #allocation3 [shape = 's32[1]{0}', space=sflag, size = 0x4, scoped, tag = 'scoped memory for tpu_custom_call.1']
    #allocation4 [shape = 's32[1]{0}', space=sflag, size = 0x4, scoped, tag = 'scoped memory for tpu_custom_call.1']
    #allocation5 [shape = 'u8[196608]{0}', space=vmem, size = 0x30000, scoped, tag = 'input window, operand 1, single buffered']
    #allocation6 [shape = 's32[1]{0}', space=sflag, size = 0x4, scoped, tag = 'scoped memory for tpu_custom_call.1']
    #allocation7 [shape = 'u8[4096]{0}', space=vmem, size = 0x1000, scoped, tag = 'output window, operand 0, single buffered']
    %8 = vsyncpa [#allocation3], 0
    %9 = vsyncpa [#allocation6], 0
    %10 = vsyncpa [#allocation4], 0
    // Predicated region
    $region2: #{tpu_custom_call.1} parent=1 // pred_check
      _
    $region3: #{tpu_custom_call.1} parent=1 // pred_check_branch
      %12 = sbr.rel (0) target = $region5
    $region4: #{tpu_custom_call.1} parent=1 // pred_region
      %s14 = ssub.s32 128, 128
      %15 = vsyncadd [#allocation3], %s14
      %s17 = sshll.u32 [#allocation2], 4
      %s18 = int_to_ptr.vmem [resolvable:$true] %s17
      %20 = dma.hbm_to_vmem [thread:$0]  %s0, 128, %s18, [#allocation3]
    $region5: #{tpu_custom_call.1} parent=1 // pred_fallthru
      _
    // Predicated region
    $region6: #{tpu_custom_call.1} parent=1 // pred_check
      _
    $region7: #{tpu_custom_call.1} parent=1 // pred_check_branch
      %22 = sbr.rel (0) target = $region9
    $region8: #{tpu_custom_call.1} parent=1 // pred_region
      %s24 = ssub.s32 6144, 6144
      %25 = vsyncadd [#allocation6], %s24
      %s26 = sshll.u32 [#allocation5], 4
      %s27 = int_to_ptr.vmem [resolvable:$true] %s26
      %32 = dma.hbm_to_vmem [thread:$0]  %s1, 6144, %s27, [#allocation6], 128, 128, 8
    $region9: #{tpu_custom_call.1} parent=1 // pred_fallthru
      _
    // Predicated region
    $region10: #{tpu_custom_call.1} parent=1 // pred_check
      _
    $region11: #{tpu_custom_call.1} parent=1 // pred_check_branch
      %34 = sbr.rel (0) target = $region13
    $region12: #{tpu_custom_call.1} parent=1 // pred_region
      _
    $region13: #{tpu_custom_call.1} parent=1 // pred_fallthru
      _
    // Predicated region
    $region14: #{tpu_custom_call.1} parent=1 // pred_check
      _
    $region15: #{tpu_custom_call.1} parent=1 // pred_check_branch
      %36 = sbr.rel (0) target = $region17
    $region16: #{tpu_custom_call.1} parent=1 // pred_region
      %37 = dma.done [#allocation3], 128
    $region17: #{tpu_custom_call.1} parent=1 // pred_fallthru
      _
    // Predicated region
    $region18: #{tpu_custom_call.1} parent=1 // pred_check
      _
    $region19: #{tpu_custom_call.1} parent=1 // pred_check_branch
      %39 = sbr.rel (0) target = $region21
    $region20: #{tpu_custom_call.1} parent=1 // pred_region
      %40 = dma.done [#allocation6], 6144
    $region21: #{tpu_custom_call.1} parent=1 // pred_fallthru
      _
    %v41 = vld [vmem:[#allocation2] sm:$0xff]
    %v42 = vld [vmem:[#allocation5] sm:$0xff]
    %v43 = vld [vmem:[#allocation5 + $0x8] sm:$0xff]
    %v44 = vld [vmem:[#allocation5 + $0x10] sm:$0xff]
    %v45 = vld [vmem:[#allocation5 + $0x18] sm:$0xff]
    %v46 = vld [vmem:[#allocation5 + $0x20] sm:$0xff]
    %v47 = vld [vmem:[#allocation5 + $0x28] sm:$0xff]
    %v48 = vld [vmem:[#allocation5 + $0x30] sm:$0xff]
    %v49 = vld [vmem:[#allocation5 + $0x38] sm:$0xff]
    %v50 = vld [vmem:[#allocation5 + $0x40] sm:$0xff]
    %v51 = vld [vmem:[#allocation5 + $0x48] sm:$0xff]
    %v52 = vld [vmem:[#allocation5 + $0x50] sm:$0xff]
    %v53 = vld [vmem:[#allocation5 + $0x58] sm:$0xff]
    %v54 = vld [vmem:[#allocation5 + $0x60] sm:$0xff]
    %v55 = vld [vmem:[#allocation5 + $0x68] sm:$0xff]
    %v56 = vld [vmem:[#allocation5 + $0x70] sm:$0xff]
    %v57 = vld [vmem:[#allocation5 + $0x78] sm:$0xff]
    %v58 = vld [vmem:[%s2] sm:$0x1]
    %v60 = vlaneseq
    %v61 = vshrl.u32 %v60, 7
    %v62 = vsub.s32 0, %v61
    %v63 = vrot.slane %v58, %v62
    %65 = vmatprep.subr.mxu0 0.0
    %66 = vmatpush1.msra.mxu0 %v42
    %67 = vmatprep.subr.mxu0 0.0
    %68 = vmatpush1.msra.mxu0 %v43
    %69 = vmatprep.subr.mxu0 0.0
    %70 = vmatpush1.msra.mxu0 %v44
    %71 = vmatprep.subr.mxu0 0.0
    %72 = vmatpush1.msra.mxu0 %v45
    %73 = vmatprep.subr.mxu0 0.0
    %74 = vmatpush1.msra.mxu0 %v46
    %75 = vmatprep.subr.mxu0 0.0
    %76 = vmatpush1.msra.mxu0 %v47
    %77 = vmatprep.subr.mxu0 0.0
    %78 = vmatpush1.msra.mxu0 %v48
    %79 = vmatprep.subr.mxu0 0.0
    %80 = vmatpush1.msra.mxu0 %v49
    %81 = vmatprep.subr.mxu0 0.0
    %82 = vmatpush1.msra.mxu0 %v50
    %83 = vmatprep.subr.mxu0 0.0
    %84 = vmatpush1.msra.mxu0 %v51
    %85 = vmatprep.subr.mxu0 0.0
    %86 = vmatpush1.msra.mxu0 %v52
    %87 = vmatprep.subr.mxu0 0.0
    %88 = vmatpush1.msra.mxu0 %v53
    %89 = vmatprep.subr.mxu0 0.0
    %90 = vmatpush1.msra.mxu0 %v54
    %91 = vmatprep.subr.mxu0 0.0
    %92 = vmatpush1.msra.mxu0 %v55
    %93 = vmatprep.subr.mxu0 0.0
    %94 = vmatpush1.msra.mxu0 %v56
    %95 = vmatprep.subr.mxu0 0.0
    %96 = vmatpush1.msra.mxu0 %v57
    %97 = vmatprep.subr.mxu0 0.0
    %98 = vmatpush1.msra.mxu0 0.0
    %99 = vmatprep.subr.mxu0 0.0
    %100 = vmatpush1.msra.mxu0 0.0
    %101 = vmatprep.subr.mxu0 0.0
    %102 = vmatpush1.msra.mxu0 0.0
    %103 = vmatprep.subr.mxu0 0.0
    %104 = vmatpush1.msra.mxu0 0.0
    %105 = vmatprep.subr.mxu0 0.0
    %106 = vmatpush1.msra.mxu0 0.0
    %107 = vmatprep.subr.mxu0 0.0
    %108 = vmatpush1.msra.mxu0 0.0
    %109 = vmatprep.subr.mxu0 0.0
    %110 = vmatpush1.msra.mxu0 0.0
    %111 = vmatprep.subr.mxu0 0.0
    %112 = vmatpush1.msra.mxu0 0.0
    %113 = vmatprep.subr.mxu0 0.0
    %114 = vmatpush1.msra.mxu0 0.0
    %115 = vmatprep.subr.mxu0 0.0
    %116 = vmatpush1.msra.mxu0 0.0
    %117 = vmatprep.subr.mxu0 0.0
    %118 = vmatpush1.msra.mxu0 0.0
    %119 = vmatprep.subr.mxu0 0.0
    %120 = vmatpush1.msra.mxu0 0.0
    %121 = vmatprep.subr.mxu0 0.0
    %122 = vmatpush1.msra.mxu0 0.0
    %123 = vmatprep.subr.mxu0 0.0
    %124 = vmatpush1.msra.mxu0 0.0
    %125 = vmatprep.subr.mxu0 0.0
    %126 = vmatpush1.msra.mxu0 0.0
    %127 = vmatprep.subr.mxu0 0.0
    %128 = vmatpush1.msra.mxu0 0.0
    %129 = vmatprep.mubr.f32.mxu0 0.0
    %130 = vmatmul.mubr.f32.gmra.mrb[0].mxu0 %v41
    %v131 = vpop.f32.mrb[0].mxu0
    %v132 = vadd.f32 %v63, %v131
    %v133 = vpop.f32.mrb[0].mxu0
    %134 = vdwg.mxu0
    %s135 = scalar_lea.vmem [#allocation5], 128
    %v136 = vld [vmem:[%s135] sm:$0xff]
    %v137 = vld [vmem:[%s135 + $0x8] sm:$0xff]
    %v138 = vld [vmem:[%s135 + $0x10] sm:$0xff]
    %v139 = vld [vmem:[%s135 + $0x18] sm:$0xff]
    %v140 = vld [vmem:[%s135 + $0x20] sm:$0xff]
    %v141 = vld [vmem:[%s135 + $0x28] sm:$0xff]
    %v142 = vld [vmem:[%s135 + $0x30] sm:$0xff]
    %v143 = vld [vmem:[%s135 + $0x38] sm:$0xff]
    %v144 = vld [vmem:[%s135 + $0x40] sm:$0xff]
    %v145 = vld [vmem:[%s135 + $0x48] sm:$0xff]
    %v146 = vld [vmem:[%s135 + $0x50] sm:$0xff]
    %v147 = vld [vmem:[%s135 + $0x58] sm:$0xff]
    %v148 = vld [vmem:[%s135 + $0x60] sm:$0xff]
    %v149 = vld [vmem:[%s135 + $0x68] sm:$0xff]
    %v150 = vld [vmem:[%s135 + $0x70] sm:$0xff]
    %v151 = vld [vmem:[%s135 + $0x78] sm:$0xff]
    %s152 = scalar_lea.vmem %s2, 1
    %v153 = vld [vmem:[%s152] sm:$0x1]
    %v155 = vlaneseq
    %v156 = vshrl.u32 %v155, 7
    %v157 = vsub.s32 0, %v156
    %v158 = vrot.slane %v153, %v157
    %160 = vmatprep.subr.mxu0 0.0
    %161 = vmatpush1.msra.mxu0 %v136
    %162 = vmatprep.subr.mxu0 0.0
    %163 = vmatpush1.msra.mxu0 %v137
    %164 = vmatprep.subr.mxu0 0.0
    %165 = vmatpush1.msra.mxu0 %v138
    %166 = vmatprep.subr.mxu0 0.0
    %167 = vmatpush1.msra.mxu0 %v139
    %168 = vmatprep.subr.mxu0 0.0
    %169 = vmatpush1.msra.mxu0 %v140
    %170 = vmatprep.subr.mxu0 0.0
    %171 = vmatpush1.msra.mxu0 %v141
    %172 = vmatprep.subr.mxu0 0.0
    %173 = vmatpush1.msra.mxu0 %v142
    %174 = vmatprep.subr.mxu0 0.0
    %175 = vmatpush1.msra.mxu0 %v143
    %176 = vmatprep.subr.mxu0 0.0
    %177 = vmatpush1.msra.mxu0 %v144
    %178 = vmatprep.subr.mxu0 0.0
    %179 = vmatpush1.msra.mxu0 %v145
    %180 = vmatprep.subr.mxu0 0.0
    %181 = vmatpush1.msra.mxu0 %v146
    %182 = vmatprep.subr.mxu0 0.0
    %183 = vmatpush1.msra.mxu0 %v147
    %184 = vmatprep.subr.mxu0 0.0
    %185 = vmatpush1.msra.mxu0 %v148
    %186 = vmatprep.subr.mxu0 0.0
    %187 = vmatpush1.msra.mxu0 %v149
    %188 = vmatprep.subr.mxu0 0.0
    %189 = vmatpush1.msra.mxu0 %v150
    %190 = vmatprep.subr.mxu0 0.0
    %191 = vmatpush1.msra.mxu0 %v151
    %192 = vmatprep.subr.mxu0 0.0
    %193 = vmatpush1.msra.mxu0 0.0
    %194 = vmatprep.subr.mxu0 0.0
    %195 = vmatpush1.msra.mxu0 0.0
    %196 = vmatprep.subr.mxu0 0.0
    %197 = vmatpush1.msra.mxu0 0.0
    %198 = vmatprep.subr.mxu0 0.0
    %199 = vmatpush1.msra.mxu0 0.0
    %200 = vmatprep.subr.mxu0 0.0
    %201 = vmatpush1.msra.mxu0 0.0
    %202 = vmatprep.subr.mxu0 0.0
    %203 = vmatpush1.msra.mxu0 0.0
    %204 = vmatprep.subr.mxu0 0.0
    %205 = vmatpush1.msra.mxu0 0.0
    %206 = vmatprep.subr.mxu0 0.0
    %207 = vmatpush1.msra.mxu0 0.0
    %208 = vmatprep.subr.mxu0 0.0
    %209 = vmatpush1.msra.mxu0 0.0
    %210 = vmatprep.subr.mxu0 0.0
    %211 = vmatpush1.msra.mxu0 0.0
    %212 = vmatprep.subr.mxu0 0.0
    %213 = vmatpush1.msra.mxu0 0.0
    %214 = vmatprep.subr.mxu0 0.0
    %215 = vmatpush1.msra.mxu0 0.0
    %216 = vmatprep.subr.mxu0 0.0
    %217 = vmatpush1.msra.mxu0 0.0
    %218 = vmatprep.subr.mxu0 0.0
    %219 = vmatpush1.msra.mxu0 0.0
    %220 = vmatprep.subr.mxu0 0.0
    %221 = vmatpush1.msra.mxu0 0.0
    %222 = vmatprep.subr.mxu0 0.0
    %223 = vmatpush1.msra.mxu0 0.0
    %224 = vmatprep.mubr.f32.mxu0 0.0
    %225 = vmatmul.mubr.f32.gmra.mrb[0].mxu0 %v132
    %v226 = vpop.f32.mrb[0].mxu0
    %v227 = vadd.f32 %v158, %v226
    %v228 = vpop.f32.mrb[0].mxu0
    %229 = vdwg.mxu0
    %s230 = scalar_lea.vmem [#allocation5], 256
    %v231 = vld [vmem:[%s230] sm:$0xff]
    %v232 = vld [vmem:[%s230 + $0x8] sm:$0xff]
    %v233 = vld [vmem:[%s230 + $0x10] sm:$0xff]
    %v234 = vld [vmem:[%s230 + $0x18] sm:$0xff]
    %v235 = vld [vmem:[%s230 + $0x20] sm:$0xff]
    %v236 = vld [vmem:[%s230 + $0x28] sm:$0xff]
    %v237 = vld [vmem:[%s230 + $0x30] sm:$0xff]
    %v238 = vld [vmem:[%s230 + $0x38] sm:$0xff]
    %v239 = vld [vmem:[%s230 + $0x40] sm:$0xff]
    %v240 = vld [vmem:[%s230 + $0x48] sm:$0xff]
    %v241 = vld [vmem:[%s230 + $0x50] sm:$0xff]
    %v242 = vld [vmem:[%s230 + $0x58] sm:$0xff]
    %v243 = vld [vmem:[%s230 + $0x60] sm:$0xff]
    %v244 = vld [vmem:[%s230 + $0x68] sm:$0xff]
    %v245 = vld [vmem:[%s230 + $0x70] sm:$0xff]
    %v246 = vld [vmem:[%s230 + $0x78] sm:$0xff]
    %s247 = scalar_lea.vmem %s2, 2
    %v248 = vld [vmem:[%s247] sm:$0x1]
    %v250 = vlaneseq
    %v251 = vshrl.u32 %v250, 7
    %v252 = vsub.s32 0, %v251
    %v253 = vrot.slane %v248, %v252
    %255 = vmatprep.subr.mxu0 0.0
    %256 = vmatpush1.msra.mxu0 %v231
    %257 = vmatprep.subr.mxu0 0.0
    %258 = vmatpush1.msra.mxu0 %v232
    %259 = vmatprep.subr.mxu0 0.0
    %260 = vmatpush1.msra.mxu0 %v233
    %261 = vmatprep.subr.mxu0 0.0
    %262 = vmatpush1.msra.mxu0 %v234
    %263 = vmatprep.subr.mxu0 0.0
    %264 = vmatpush1.msra.mxu0 %v235
    %265 = vmatprep.subr.mxu0 0.0
    %266 = vmatpush1.msra.mxu0 %v236
    %267 = vmatprep.subr.mxu0 0.0
    %268 = vmatpush1.msra.mxu0 %v237
    %269 = vmatprep.subr.mxu0 0.0
    %270 = vmatpush1.msra.mxu0 %v238
    %271 = vmatprep.subr.mxu0 0.0
    %272 = vmatpush1.msra.mxu0 %v239
    %273 = vmatprep.subr.mxu0 0.0
    %274 = vmatpush1.msra.mxu0 %v240
    %275 = vmatprep.subr.mxu0 0.0
    %276 = vmatpush1.msra.mxu0 %v241
    %277 = vmatprep.subr.mxu0 0.0
    %278 = vmatpush1.msra.mxu0 %v242
    %279 = vmatprep.subr.mxu0 0.0
    %280 = vmatpush1.msra.mxu0 %v243
    %281 = vmatprep.subr.mxu0 0.0
    %282 = vmatpush1.msra.mxu0 %v244
    %283 = vmatprep.subr.mxu0 0.0
    %284 = vmatpush1.msra.mxu0 %v245
    %285 = vmatprep.subr.mxu0 0.0
    %286 = vmatpush1.msra.mxu0 %v246
    %287 = vmatprep.subr.mxu0 0.0
    %288 = vmatpush1.msra.mxu0 0.0
    %289 = vmatprep.subr.mxu0 0.0
    %290 = vmatpush1.msra.mxu0 0.0
    %291 = vmatprep.subr.mxu0 0.0
    %292 = vmatpush1.msra.mxu0 0.0
    %293 = vmatprep.subr.mxu0 0.0
    %294 = vmatpush1.msra.mxu0 0.0
    %295 = vmatprep.subr.mxu0 0.0
    %296 = vmatpush1.msra.mxu0 0.0
    %297 = vmatprep.subr.mxu0 0.0
    %298 = vmatpush1.msra.mxu0 0.0
    %299 = vmatprep.subr.mxu0 0.0
    %300 = vmatpush1.msra.mxu0 0.0
    %301 = vmatprep.subr.mxu0 0.0
    %302 = vmatpush1.msra.mxu0 0.0
    %303 = vmatprep.subr.mxu0 0.0
    %304 = vmatpush1.msra.mxu0 0.0
    %305 = vmatprep.subr.mxu0 0.0
    %306 = vmatpush1.msra.mxu0 0.0
    %307 = vmatprep.subr.mxu0 0.0
    %308 = vmatpush1.msra.mxu0 0.0
    %309 = vmatprep.subr.mxu0 0.0
    %310 = vmatpush1.msra.mxu0 0.0
    %311 = vmatprep.subr.mxu0 0.0
    %312 = vmatpush1.msra.mxu0 0.0
    %313 = vmatprep.subr.mxu0 0.0
    %314 = vmatpush1.msra.mxu0 0.0
    %315 = vmatprep.subr.mxu0 0.0
    %316 = vmatpush1.msra.mxu0 0.0
    %317 = vmatprep.subr.mxu0 0.0
    %318 = vmatpush1.msra.mxu0 0.0
    %319 = vmatprep.mubr.f32.mxu0 0.0
    %320 = vmatmul.mubr.f32.gmra.mrb[0].mxu0 %v227
    %v321 = vpop.f32.mrb[0].mxu0
    %v322 = vadd.f32 %v253, %v321
    %v323 = vpop.f32.mrb[0].mxu0
    %324 = vdwg.mxu0
    %325 = vst [vmem:[#allocation7] sm:$0xff] %v322
    // Predicated region
    $region22: #{tpu_custom_call.1} parent=1 // pred_check
      _
    $region23: #{tpu_custom_call.1} parent=1 // pred_check_branch
      %327 = sbr.rel (0) target = $region25
    $region24: #{tpu_custom_call.1} parent=1 // pred_region
      %s329 = ssub.s32 128, 128
      %330 = vsyncadd [#allocation4], %s329
      %s332 = sshll.u32 [#allocation7], 4
      %s333 = int_to_ptr.vmem [resolvable:$true] %s332
      %335 = dma.vmem_to_hbm [thread:$0]  %s333, 128, %s3, [#allocation4]
    $region25: #{tpu_custom_call.1} parent=1 // pred_fallthru
      _
    // Predicated region
    $region26: #{tpu_custom_call.1} parent=1 // pred_check
      _
    $region27: #{tpu_custom_call.1} parent=1 // pred_check_branch
      %337 = sbr.rel (0) target = $region29
    $region28: #{tpu_custom_call.1} parent=1 // pred_region
      %338 = dma.done [#allocation4], 128
    $region29: #{tpu_custom_call.1} parent=1 // pred_fallthru
      _
    %339 = vsyncpa [#allocation3], 1
    %340 = vsyncpa [#allocation6], 1
    %341 = vsyncpa [#allocation4], 1

</llo_original>
